<compile_context>
chip_gen: v5e
topology: v5e:2x2
jax: 0.10.0
libtpu: 0.0.40
codegen_flags: <defaults>
</compile_context>

<pallas_src>
import functools

import jax
import jax.numpy as jnp
from jax.experimental import pallas as pl
from jax.experimental.pallas import tpu as pltpu


# ---------------------------------------------------------------------------
# Fused single-pass kernel: conv matmul + BN stats + in-place affine epilogue.
# ---------------------------------------------------------------------------
def _fused_conv_bn_kernel(w_ref, g_ref, b_ref, p_ref, o_ref, sum_ref, ssq_ref,
                          *, n_tiles, tm, m_total, eps):
    # w_ref:   (C_out, K)   conv weight (resident across the grid)
    # g_ref:   (C_out, 1)   BN gamma
    # b_ref:   (C_out, 1)   BN beta
    # p_ref:   (K, tm)      im2col patch tile (M on lanes, streamed)
    # o_ref:   (C_out, M)   resident output block (written back to HBM once)
    # sum/ssq: (C_out, 1)   per-channel running sums (VMEM scratch)
    i = pl.program_id(0)

    @pl.when(i == 0)
    def _():
        sum_ref[...] = jnp.zeros_like(sum_ref)
        ssq_ref[...] = jnp.zeros_like(ssq_ref)

    y = jnp.dot(w_ref[...], p_ref[...], preferred_element_type=jnp.float32)
    if n_tiles == 1:
        o_ref[...] = y
    else:
        off = pl.multiple_of(i * tm, 128)        # tm is a multiple of 128 here
        o_ref[:, pl.ds(off, tm)] = y
    sum_ref[...] += jnp.sum(y, axis=1, keepdims=True)
    ssq_ref[...] += jnp.sum(y * y, axis=1, keepdims=True)

    @pl.when(i == n_tiles - 1)
    def _():
        inv_m = 1.0 / float(m_total)
        mean = sum_ref[...] * inv_m
        var = jnp.maximum(ssq_ref[...] * inv_m - mean * mean, 0.0)
        scale = g_ref[...] * jax.lax.rsqrt(var + eps)      # (C_out, 1)
        shift = b_ref[...] - mean * scale                  # (C_out, 1)
        o_ref[...] = o_ref[...] * scale + shift            # in-place BN epilogue


# ---------------------------------------------------------------------------
# Two-pass fallback kernels (used when (C_out, M) cannot stay VMEM-resident).
# ---------------------------------------------------------------------------
def _conv_stats_kernel(w_ref, p_ref, y_ref, sum_ref, ssq_ref):
    y = jnp.dot(w_ref[...], p_ref[...], preferred_element_type=jnp.float32)
    y_ref[...] = y

    @pl.when(pl.program_id(0) == 0)
    def _():
        sum_ref[...] = jnp.zeros_like(sum_ref)
        ssq_ref[...] = jnp.zeros_like(ssq_ref)

    sum_ref[...] += jnp.sum(y, axis=1, keepdims=True)
    ssq_ref[...] += jnp.sum(y * y, axis=1, keepdims=True)


def _affine_kernel(scale_ref, shift_ref, y_ref, o_ref):
    o_ref[...] = (y_ref[...] * scale_ref[...] + shift_ref[...]).astype(o_ref.dtype)


# ---------------------------------------------------------------------------
# Helpers
# ---------------------------------------------------------------------------
def _largest_tile_m(M, bytes_per_lane, vmem_budget_bytes, max_lanes=2048):
    """Largest multiple-of-128 divisor of M whose per-lane footprint fits the
    budget (and <= max_lanes).  Falls back to the full M (single block)."""
    cap = max(128, min(max_lanes,
                       (vmem_budget_bytes // max(bytes_per_lane, 1)) // 128 * 128))
    best = None
    t = 128
    while t <= min(M, cap):
        if M % t == 0:
            best = t
        t += 128
    return best if best is not None else M


def _im2col_lane_dense(x, kh, kw, stride, padding, Ho, Wo):
    """(N, C_in, H, W) -> (K, M) with K = C_in*kh*kw ordered to match the OIHW
    weight flattening, and M = N*Ho*Wo on the lane axis."""
    N, C_in, _, _ = x.shape
    s, p = stride, padding
    xp = jnp.pad(x, ((0, 0), (0, 0), (p, p), (p, p)))
    taps = []
    for i in range(kh):
        for j in range(kw):
            taps.append(xp[:, :, i:i + s * Ho:s, j:j + s * Wo:s])  # (N, C_in, Ho, Wo)
    taps = jnp.stack(taps, axis=0)                  # (kh*kw, N, C_in, Ho, Wo)
    patches = taps.transpose(2, 0, 1, 3, 4)         # (C_in, kh*kw, N, Ho, Wo)
    return patches.reshape(C_in * kh * kw, N * Ho * Wo).astype(jnp.float32)


# ---------------------------------------------------------------------------
# Forward pass
# ---------------------------------------------------------------------------
def identical_block_forward(x, conv_w, conv_b, bn_gamma, bn_beta, *,
                            stride, padding, eps=1e-5,
                            fused_vmem_budget_bytes=20 * 1024 * 1024):
    """nn.Conv2d -> nn.BatchNorm2d (training mode) -> nn.Identity.

    x: (N, C_in, H, W) f32 NCHW, conv_w: (C_out, C_in, kh, kw) OIHW.
    conv_b is accepted for API parity but folded away: BatchNorm subtracts the
    per-channel mean, so a per-channel constant bias cannot affect the output.
    """
    del conv_b  # exactly cancelled by BatchNorm's mean subtraction
    N, C_in, H, W = x.shape
    C_out, _, kh, kw = conv_w.shape
    s, p = stride, padding
    Ho = (H + 2 * p - kh) // s + 1
    Wo = (W + 2 * p - kw) // s + 1
    M = N * Ho * Wo
    K = C_in * kh * kw

    # TODO(synk): at ResNet-scale H,W fold this kh*kw-duplicating im2col into the
    # kernel (per-tile K-tap accumulation / manual DMA) to avoid the expanded
    # patch matrix's extra HBM round trip.
    patches = _im2col_lane_dense(x, kh, kw, s, p, Ho, Wo)          # (K, M)
    w2d = conv_w.reshape(C_out, K).astype(jnp.float32)             # (C_out, K)
    g2d = bn_gamma.reshape(C_out, 1).astype(jnp.float32)
    beta2d = bn_beta.reshape(C_out, 1).astype(jnp.float32)

    # Conservative footprint of everything resident across the fused grid
    # (resident output + weights counted double-buffered, plus small params/stats).
    resident_bytes = 4 * (2 * C_out * M + 2 * C_out * K + 8 * C_out)
    patch_lane_bytes = 4 * 2 * K                   # double-buffered patch tile / lane
    use_fused = (resident_bytes + patch_lane_bytes * max(min(M, 128), 128)
                 <= fused_vmem_budget_bytes)

    if use_fused:
        # --- single fused pass: conv + BN stats + in-place affine epilogue ---
        tm = _largest_tile_m(M, patch_lane_bytes,
                             max(fused_vmem_budget_bytes - resident_bytes, 0))
        n_tiles = M // tm
        kernel = functools.partial(_fused_conv_bn_kernel,
                                   n_tiles=n_tiles, tm=tm, m_total=M, eps=eps)
        out2d = pl.pallas_call(
            kernel,
            out_shape=jax.ShapeDtypeStruct((C_out, M), jnp.float32),
            grid_spec=pltpu.PrefetchScalarGridSpec(
                num_scalar_prefetch=0,
                grid=(n_tiles,),
                in_specs=[
                    pl.BlockSpec((C_out, K), lambda i: (0, 0)),   # weights (resident)
                    pl.BlockSpec((C_out, 1), lambda i: (0, 0)),   # gamma
                    pl.BlockSpec((C_out, 1), lambda i: (0, 0)),   # beta
                    pl.BlockSpec((K, tm), lambda i: (0, i)),      # patch tiles
                ],
                out_specs=pl.BlockSpec((C_out, M), lambda i: (0, 0)),  # resident out
                scratch_shapes=[pltpu.VMEM((C_out, 1), jnp.float32),
                                pltpu.VMEM((C_out, 1), jnp.float32)],
            ),
            compiler_params=pltpu.CompilerParams(
                dimension_semantics=("arbitrary",)),   # stats/output live across tiles
        )(w2d, g2d, beta2d, patches)
    else:
        # --- two-pass fallback for very large C_out * M ---
        tm = _largest_tile_m(M, 4 * 2 * (K + C_out), 8 * 1024 * 1024,
                             max_lanes=1024)
        n_tiles = M // tm

        y2d, ssum, ssq = pl.pallas_call(
            _conv_stats_kernel,
            out_shape=(
                jax.ShapeDtypeStruct((C_out, M), jnp.float32),
                jax.ShapeDtypeStruct((C_out, 1), jnp.float32),
                jax.ShapeDtypeStruct((C_out, 1), jnp.float32),
            ),
            grid_spec=pltpu.PrefetchScalarGridSpec(
                num_scalar_prefetch=0,
                grid=(n_tiles,),
                in_specs=[
                    pl.BlockSpec((C_out, K), lambda i: (0, 0)),
                    pl.BlockSpec((K, tm), lambda i: (0, i)),
                ],
                out_specs=[
                    pl.BlockSpec((C_out, tm), lambda i: (0, i)),
                    pl.BlockSpec((C_out, 1), lambda i: (0, 0)),
                    pl.BlockSpec((C_out, 1), lambda i: (0, 0)),
                ],
            ),
            compiler_params=pltpu.CompilerParams(
                dimension_semantics=("arbitrary",)),
        )(w2d, patches)

        inv_m = 1.0 / float(M)
        mean = ssum * inv_m
        var = jnp.maximum(ssq * inv_m - mean * mean, 0.0)
        scale = g2d * jax.lax.rsqrt(var + eps)
        shift = beta2d - mean * scale

        out2d = pl.pallas_call(
            _affine_kernel,
            out_shape=jax.ShapeDtypeStruct((C_out, M), jnp.float32),
            grid_spec=pltpu.PrefetchScalarGridSpec(
                num_scalar_prefetch=0,
                grid=(n_tiles,),
                in_specs=[
                    pl.BlockSpec((C_out, 1), lambda i: (0, 0)),
                    pl.BlockSpec((C_out, 1), lambda i: (0, 0)),
                    pl.BlockSpec((C_out, tm), lambda i: (0, i)),
                ],
                out_specs=pl.BlockSpec((C_out, tm), lambda i: (0, i)),
            ),
            compiler_params=pltpu.CompilerParams(
                dimension_semantics=("parallel",)),
        )(scale, shift, y2d)

    # (C_out, M) -> (N, C_out, Ho, Wo)
    return out2d.reshape(C_out, N, Ho, Wo).transpose(1, 0, 2, 3)


# ---------------------------------------------------------------------------
# Pure-JAX reference
# ---------------------------------------------------------------------------
def _reference(x, conv_w, conv_b, bn_gamma, bn_beta, *, stride, padding, eps=1e-5):
    y = jax.lax.conv_general_dilated(
        x, conv_w, window_strides=(stride, stride),
        padding=[(padding, padding), (padding, padding)],
        dimension_numbers=("NCHW", "OIHW", "NCHW"))
    y = y + conv_b.reshape(1, -1, 1, 1)
    mean = jnp.mean(y, axis=(0, 2, 3), keepdims=True)
    var = jnp.mean((y - mean) ** 2, axis=(0, 2, 3), keepdims=True)
    y = (y - mean) * jax.lax.rsqrt(var + eps)
    return y * bn_gamma.reshape(1, -1, 1, 1) + bn_beta.reshape(1, -1, 1, 1)


if __name__ == "__main__":
    # Identical_Block(in_c=4, out_c=8, k_size=3, stride=1, padding=1)
    in_c, out_c, k_size, stride, padding = 4, 8, 3, 1, 1
    N, H, W = 2, 16, 16

    key = jax.random.PRNGKey(0)
    kx, kw_, kb, kg, kbeta = jax.random.split(key, 5)
    x = jax.random.normal(kx, (N, in_c, H, W), dtype=jnp.float32)
    conv_w = jax.random.normal(kw_, (out_c, in_c, k_size, k_size), jnp.float32) * 0.1
    conv_b = jax.random.normal(kb, (out_c,), jnp.float32) * 0.1
    bn_gamma = jnp.ones((out_c,), jnp.float32)   # BatchNorm2d default init
    bn_beta = jnp.zeros((out_c,), jnp.float32)

    out = identical_block_forward(x, conv_w, conv_b, bn_gamma, bn_beta,
                                  stride=stride, padding=padding)
    out = jax.block_until_ready(out)
    ref = _reference(x, conv_w, conv_b, bn_gamma, bn_beta,
                     stride=stride, padding=padding)
    assert out.shape == (N, out_c, H, W)
    assert jnp.allclose(out, ref, atol=1e-4, rtol=1e-4)

    # Multi-tile fused path (M = 4*32*32 = 4096 -> 2 M-tiles) with non-default
    # BN affine parameters to exercise the scale/shift epilogue properly.
    g2 = jax.random.normal(kg, (out_c,), jnp.float32) * 0.5 + 1.0
    b2 = jax.random.normal(kbeta, (out_c,), jnp.float32) * 0.5
    x2 = jax.random.normal(jax.random.PRNGKey(1), (4, in_c, 32, 32), jnp.float32)
    out2 = jax.block_until_ready(
        identical_block_forward(x2, conv_w, conv_b, g2, b2,
                                stride=stride, padding=padding))
    ref2 = _reference(x2, conv_w, conv_b, g2, b2, stride=stride, padding=padding)
    assert jnp.allclose(out2, ref2, atol=1e-4, rtol=1e-4)

    # Strided conv (stride=2) exercising the im2col glue at a different geometry.
    out3 = jax.block_until_ready(
        identical_block_forward(x, conv_w, conv_b, g2, b2, stride=2, padding=1))
    ref3 = _reference(x, conv_w, conv_b, g2, b2, stride=2, padding=1)
    assert jnp.allclose(out3, ref3, atol=1e-4, rtol=1e-4)

    # Force the two-pass fallback (large C_out*M regime) and validate it too.
    out4 = jax.block_until_ready(
        identical_block_forward(x2, conv_w, conv_b, g2, b2,
                                stride=stride, padding=padding,
                                fused_vmem_budget_bytes=0))
    assert jnp.allclose(out4, ref2, atol=1e-4, rtol=1e-4)

    print("KERNEL_OK")
</pallas_src>

<mosaic_0001>
module attributes {stable_mosaic.version = 11 : i64} {
  func.func @_fused_conv_bn_kernel(%arg0: i32, %arg1: memref<8x36xf32, #tpu.memory_space<vmem>>, %arg2: memref<8x1xf32, #tpu.memory_space<vmem>>, %arg3: memref<8x1xf32, #tpu.memory_space<vmem>>, %arg4: memref<36x512xf32, #tpu.memory_space<vmem>>, %arg5: memref<8x512xf32, #tpu.memory_space<vmem>>, %arg6: memref<8x1xf32, #tpu.memory_space<vmem>>, %arg7: memref<8x1xf32, #tpu.memory_space<vmem>>) attributes {dimension_semantics = [#tpu.dimension_semantics<arbitrary>], iteration_bounds = array<i64: 1>, scalar_prefetch = 0 : i64, scratch_operands = 2 : i64, tpu.core_type = #tpu.core_type<tc>, window_params = [{pipeline_mode = #tpu.pipeline_mode<synchronous>, transform_indices = @transform_0, window_bounds = array<i64: 8, 36>}, {pipeline_mode = #tpu.pipeline_mode<synchronous>, transform_indices = @transform_1, window_bounds = array<i64: 8, 1>}, {pipeline_mode = #tpu.pipeline_mode<synchronous>, transform_indices = @transform_2, window_bounds = array<i64: 8, 1>}, {transform_indices = @transform_3, window_bounds = array<i64: 36, 512>}, {pipeline_mode = #tpu.pipeline_mode<synchronous>, transform_indices = @transform_4, window_bounds = array<i64: 8, 512>}]} {
    %c0_i32 = arith.constant 0 : i32
    %0 = arith.cmpi eq, %arg0, %c0_i32 : i32
    %1 = arith.extui %0 : i1 to i32
    %c0_i32_0 = arith.constant 0 : i32
    %2 = arith.cmpi ne, %1, %c0_i32_0 : i32
    scf.if %2 {
      %cst_18 = arith.constant 0.000000e+00 : f32
      %21 = vector.broadcast %cst_18 : f32 to vector<8x1xf32>
      %c0_19 = arith.constant 0 : index
      %c0_20 = arith.constant 0 : index
      %22 = vector.load %arg6[%c0_19, %c0_20] : memref<8x1xf32, #tpu.memory_space<vmem>>, vector<8x1xf32>
      tpu.vector_store %arg6[%c0_19, %c0_20], %21 {strides = array<i32>} : memref<8x1xf32, #tpu.memory_space<vmem>>, vector<8x1xf32>,
      %cst_21 = arith.constant 0.000000e+00 : f32
      %23 = vector.broadcast %cst_21 : f32 to vector<8x1xf32>
      %c0_22 = arith.constant 0 : index
      %c0_23 = arith.constant 0 : index
      %24 = vector.load %arg7[%c0_22, %c0_23] : memref<8x1xf32, #tpu.memory_space<vmem>>, vector<8x1xf32>
      tpu.vector_store %arg7[%c0_22, %c0_23], %23 {strides = array<i32>} : memref<8x1xf32, #tpu.memory_space<vmem>>, vector<8x1xf32>,
    } else {
    }
    %c0 = arith.constant 0 : index
    %c0_1 = arith.constant 0 : index
    %3 = vector.load %arg1[%c0, %c0_1] : memref<8x36xf32, #tpu.memory_space<vmem>>, vector<8x36xf32>
    %c0_2 = arith.constant 0 : index
    %c0_3 = arith.constant 0 : index
    %4 = vector.load %arg4[%c0_2, %c0_3] : memref<36x512xf32, #tpu.memory_space<vmem>>, vector<36x512xf32>
    %cst = arith.constant dense<0.000000e+00> : vector<8x512xf32>
    %5 = tpu.matmul %3, %4, %cst {dimension_numbers = #tpu.dot_dimension_numbers<[1], [0], [0], [1], [0, 0, 1, 1], [], []>} : vector<8x36xf32>, vector<36x512xf32>, vector<8x512xf32> -> vector<8x512xf32>
    %c0_4 = arith.constant 0 : index
    %c0_5 = arith.constant 0 : index
    %6 = vector.load %arg5[%c0_4, %c0_5] : memref<8x512xf32, #tpu.memory_space<vmem>>, vector<8x512xf32>
    tpu.vector_store %arg5[%c0_4, %c0_5], %5 {strides = array<i32>} : memref<8x512xf32, #tpu.memory_space<vmem>>, vector<8x512xf32>,
    %c0_6 = arith.constant 0 : index
    %c0_7 = arith.constant 0 : index
    %7 = vector.load %arg6[%c0_6, %c0_7] : memref<8x1xf32, #tpu.memory_space<vmem>>, vector<8x1xf32>
    %cst_8 = arith.constant dense<0.000000e+00> : vector<8xf32>
    %8 = vector.multi_reduction <add>, %5, %cst_8 [1] : vector<8x512xf32> to vector<8xf32>
    %9 = vector.shape_cast %8 : vector<8xf32> to vector<8x1xf32>
    %10 = arith.addf %7, %9 : vector<8x1xf32>
    %c0_9 = arith.constant 0 : index
    %c0_10 = arith.constant 0 : index
    %11 = vector.load %arg6[%c0_9, %c0_10] : memref<8x1xf32, #tpu.memory_space<vmem>>, vector<8x1xf32>
    tpu.vector_store %arg6[%c0_9, %c0_10], %10 {strides = array<i32>} : memref<8x1xf32, #tpu.memory_space<vmem>>, vector<8x1xf32>,
    %c0_11 = arith.constant 0 : index
    %c0_12 = arith.constant 0 : index
    %12 = vector.load %arg7[%c0_11, %c0_12] : memref<8x1xf32, #tpu.memory_space<vmem>>, vector<8x1xf32>
    %13 = arith.mulf %5, %5 : vector<8x512xf32>
    %cst_13 = arith.constant dense<0.000000e+00> : vector<8xf32>
    %14 = vector.multi_reduction <add>, %13, %cst_13 [1] : vector<8x512xf32> to vector<8xf32>
    %15 = vector.shape_cast %14 : vector<8xf32> to vector<8x1xf32>
    %16 = arith.addf %12, %15 : vector<8x1xf32>
    %c0_14 = arith.constant 0 : index
    %c0_15 = arith.constant 0 : index
    %17 = vector.load %arg7[%c0_14, %c0_15] : memref<8x1xf32, #tpu.memory_space<vmem>>, vector<8x1xf32>
    tpu.vector_store %arg7[%c0_14, %c0_15], %16 {strides = array<i32>} : memref<8x1xf32, #tpu.memory_space<vmem>>, vector<8x1xf32>,
    %c0_i32_16 = arith.constant 0 : i32
    %18 = arith.cmpi eq, %arg0, %c0_i32_16 : i32
    %19 = arith.extui %18 : i1 to i32
    %c0_i32_17 = arith.constant 0 : i32
    %20 = arith.cmpi ne, %19, %c0_i32_17 : i32
    scf.if %20 {
      %c0_18 = arith.constant 0 : index
      %c0_19 = arith.constant 0 : index
      %21 = vector.load %arg6[%c0_18, %c0_19] : memref<8x1xf32, #tpu.memory_space<vmem>>, vector<8x1xf32>
      %cst_20 = arith.constant 0.001953125 : f32
      %22 = vector.broadcast %cst_20 : f32 to vector<8x1xf32>
      %23 = arith.mulf %21, %22 : vector<8x1xf32>
      %c0_21 = arith.constant 0 : index
      %c0_22 = arith.constant 0 : index
      %24 = vector.load %arg7[%c0_21, %c0_22] : memref<8x1xf32, #tpu.memory_space<vmem>>, vector<8x1xf32>
      %cst_23 = arith.constant 0.001953125 : f32
      %25 = vector.broadcast %cst_23 : f32 to vector<8x1xf32>
      %26 = arith.mulf %24, %25 : vector<8x1xf32>
      %27 = arith.mulf %23, %23 : vector<8x1xf32>
      %28 = arith.subf %26, %27 : vector<8x1xf32>
      %cst_24 = arith.constant 0.000000e+00 : f32
      %29 = vector.broadcast %cst_24 : f32 to vector<8x1xf32>
      %30 = arith.maximumf %28, %29 : vector<8x1xf32>
      %c0_25 = arith.constant 0 : index
      %c0_26 = arith.constant 0 : index
      %31 = vector.load %arg2[%c0_25, %c0_26] : memref<8x1xf32, #tpu.memory_space<vmem>>, vector<8x1xf32>
      %cst_27 = arith.constant 9.99999974E-6 : f32
      %32 = vector.broadcast %cst_27 : f32 to vector<8x1xf32>
      %33 = arith.addf %30, %32 : vector<8x1xf32>
      %34 = math.rsqrt %33 : vector<8x1xf32>
      %35 = arith.mulf %31, %34 : vector<8x1xf32>
      %c0_28 = arith.constant 0 : index
      %c0_29 = arith.constant 0 : index
      %36 = vector.load %arg3[%c0_28, %c0_29] : memref<8x1xf32, #tpu.memory_space<vmem>>, vector<8x1xf32>
      %37 = arith.mulf %23, %35 : vector<8x1xf32>
      %38 = arith.subf %36, %37 : vector<8x1xf32>
      %c0_30 = arith.constant 0 : index
      %c0_31 = arith.constant 0 : index
      %39 = vector.load %arg5[%c0_30, %c0_31] : memref<8x512xf32, #tpu.memory_space<vmem>>, vector<8x512xf32>
      %40 = vector.broadcast %35 : vector<8x1xf32> to vector<8x512xf32>
      %41 = arith.mulf %39, %40 : vector<8x512xf32>
      %42 = vector.broadcast %38 : vector<8x1xf32> to vector<8x512xf32>
      %43 = arith.addf %41, %42 : vector<8x512xf32>
      %c0_32 = arith.constant 0 : index
      %c0_33 = arith.constant 0 : index
      %44 = vector.load %arg5[%c0_32, %c0_33] : memref<8x512xf32, #tpu.memory_space<vmem>>, vector<8x512xf32>
      tpu.vector_store %arg5[%c0_32, %c0_33], %43 {strides = array<i32>} : memref<8x512xf32, #tpu.memory_space<vmem>>, vector<8x512xf32>,
    } else {
    }
    return
  }
  func.func @transform_0(%arg0: i32) -> (i32, i32) {
    %c0_i32 = arith.constant 0 : i32
    %c0_i32_0 = arith.constant 0 : i32
    %c0_i32_1 = arith.constant 0 : i32
    return %c0_i32, %c0_i32_0 : i32, i32
  }
  func.func @transform_1(%arg0: i32) -> (i32, i32) {
    %c0_i32 = arith.constant 0 : i32
    %c0_i32_0 = arith.constant 0 : i32
    %c0_i32_1 = arith.constant 0 : i32
    return %c0_i32, %c0_i32_0 : i32, i32
  }
  func.func @transform_2(%arg0: i32) -> (i32, i32) {
    %c0_i32 = arith.constant 0 : i32
    %c0_i32_0 = arith.constant 0 : i32
    %c0_i32_1 = arith.constant 0 : i32
    return %c0_i32, %c0_i32_0 : i32, i32
  }
  func.func @transform_3(%arg0: i32) -> (i32, i32) {
    %c0_i32 = arith.constant 0 : i32
    %c0_i32_0 = arith.constant 0 : i32
    return %c0_i32, %arg0 : i32, i32
  }
  func.func @transform_4(%arg0: i32) -> (i32, i32) {
    %c0_i32 = arith.constant 0 : i32
    %c0_i32_0 = arith.constant 0 : i32
    %c0_i32_1 = arith.constant 0 : i32
    return %c0_i32, %c0_i32_0 : i32, i32
  }
}

</mosaic_0001>

<llo_original>
// kernel: tpu_custom_call.1
$region0: #{tpu_custom_call.1}
  #allocation0 [shape = 'u32[]', space=smem, size = 0x4, offset = 0x4, fixed_abs, tag = 'smem constant byte address 0x4 - core index']
  #allocation1 [shape = 'u32[72,128]{1,0:T(1,128)}', space=vmem, size = 0x9000, scoped, tag = 'internal scratch']
  #allocation2 [shape = 'f32[8,1]{1,0:T(8,128)}', space=vmem, size = 0x1000, scoped, tag = 'scratch operand']
  #allocation3 [shape = 'f32[8,1]{1,0:T(8,128)}', space=vmem, size = 0x1000, scoped, tag = 'scratch operand']
  %s0 = inlined_call_operand.vmem [shape: f32[8,36], index: 0, kind: input, shape index: {}]
  %s1 = inlined_call_operand.vmem [shape: f32[8,1], index: 1, kind: input, shape index: {}]
  %s2 = inlined_call_operand.vmem [shape: f32[8,1], index: 2, kind: input, shape index: {}]
  %s3 = inlined_call_operand.hbm [shape: f32[36,512], index: 3, kind: input, shape index: {}]
  %s4 = inlined_call_operand.hbm [shape: f32[8,512], index: 4, kind: output, shape index: {}]
  %s5 = sld [smem:[#allocation0]]
  $region38: #{tpu_custom_call.1} parent=0
    _
  %s7 = ssub.s32 1, %s5
  %s8 = scalar_select 0, %s7, %s5
  $region1: #{tpu_custom_call.1} parent=0
    #allocation4 [shape = 'u8[81920]{0}', space=vmem, size = 0x14000, scoped, tag = 'input window, operand 3, single buffered']
    #allocation5 [shape = 's32[1]{0}', space=sflag, size = 0x4, scoped, tag = 'scoped memory for tpu_custom_call.1']
    #allocation6 [shape = 's32[1]{0}', space=sflag, size = 0x4, scoped, tag = 'scoped memory for tpu_custom_call.1']
    #allocation7 [shape = 'u8[16384]{0}', space=vmem, size = 0x4000, scoped, tag = 'output window, operand 0, single buffered']
    %9 = vsyncpa [#allocation5], 0
    %10 = vsyncpa [#allocation6], 0
    // Predicated region
    $region2: #{tpu_custom_call.1} parent=1 // pred_check
      _
    $region3: #{tpu_custom_call.1} parent=1 // pred_check_branch
      %12 = sbr.rel (0) target = $region5
    $region4: #{tpu_custom_call.1} parent=1 // pred_region
      _
    $region5: #{tpu_custom_call.1} parent=1 // pred_fallthru
      _
    // Predicated region
    $region6: #{tpu_custom_call.1} parent=1 // pred_check
      _
    $region7: #{tpu_custom_call.1} parent=1 // pred_check_branch
      %14 = sbr.rel (0) target = $region9
    $region8: #{tpu_custom_call.1} parent=1 // pred_region
      _
    $region9: #{tpu_custom_call.1} parent=1 // pred_fallthru
      _
    // Predicated region
    $region10: #{tpu_custom_call.1} parent=1 // pred_check
      _
    $region11: #{tpu_custom_call.1} parent=1 // pred_check_branch
      %16 = sbr.rel (0) target = $region13
    $region12: #{tpu_custom_call.1} parent=1 // pred_region
      _
    $region13: #{tpu_custom_call.1} parent=1 // pred_fallthru
      _
    // Predicated region
    $region14: #{tpu_custom_call.1} parent=1 // pred_check
      _
    $region15: #{tpu_custom_call.1} parent=1 // pred_check_branch
      %18 = sbr.rel (0) target = $region17
    $region16: #{tpu_custom_call.1} parent=1 // pred_region
      %20 = vsyncadd [#allocation5], 0
      %s21 = sshll.u32 %s3, 4
      %s22 = int_to_ptr.hbm [resolvable:$true] %s21
      %s23 = sshll.u32 [#allocation4], 4
      %s24 = int_to_ptr.vmem [resolvable:$true] %s23
      %29 = dma.hbm_to_vmem [thread:$0]  %s22, 2560, %s24, [#allocation5], 512, 512, 32
    $region17: #{tpu_custom_call.1} parent=1 // pred_fallthru
      _
    // Predicated region
    $region18: #{tpu_custom_call.1} parent=1 // pred_check
      _
    $region19: #{tpu_custom_call.1} parent=1 // pred_check_branch
      %31 = sbr.rel (0) target = $region21
    $region20: #{tpu_custom_call.1} parent=1 // pred_region
      %33 = dma.done [#allocation5], 2560
    $region21: #{tpu_custom_call.1} parent=1 // pred_fallthru
      _
    %p34 = scmp.eq.s32.totalorder 0, 0
    // Predicated region
    $region22: #{tpu_custom_call.1} parent=1 // pred_check
      %p35 = pneg %p34
    $region23: #{tpu_custom_call.1} parent=1 // pred_check_branch
      %37 = sbr.rel (%p35) target = $region25
    $region24: #{tpu_custom_call.1} parent=1 // pred_region
      %vm38 = vcmask 7168
      %39 = vst.msk [vmem:[#allocation2] sm:$0xff] %vm38, 0.0
      %40 = vst.msk [vmem:[#allocation3] sm:$0xff] %vm38, 0.0
    $region25: #{tpu_custom_call.1} parent=1 // pred_fallthru
      _
    %v41 = vld [vmem:[%s0] sm:$0xff]
    %v42 = vld [vmem:[#allocation4] sm:$0xff]
    %v43 = vld [vmem:[#allocation4 + $0x8] sm:$0xff]
    %v44 = vld [vmem:[#allocation4 + $0x10] sm:$0xff]
    %v45 = vld [vmem:[#allocation4 + $0x18] sm:$0xff]
    %v46 = vld [vmem:[#allocation4 + $0x20] sm:$0xff]
    %v47 = vld [vmem:[#allocation4 + $0x28] sm:$0xff]
    %v48 = vld [vmem:[#allocation4 + $0x30] sm:$0xff]
    %v49 = vld [vmem:[#allocation4 + $0x38] sm:$0xff]
    %v50 = vld [vmem:[#allocation4 + $0x40] sm:$0xff]
    %v51 = vld [vmem:[#allocation4 + $0x48] sm:$0xff]
    %v52 = vld [vmem:[#allocation4 + $0x50] sm:$0xff]
    %v53 = vld [vmem:[#allocation4 + $0x58] sm:$0xff]
    %v54 = vld [vmem:[#allocation4 + $0x60] sm:$0xff]
    %v55 = vld [vmem:[#allocation4 + $0x68] sm:$0xff]
    %v56 = vld [vmem:[#allocation4 + $0x70] sm:$0xff]
    %v57 = vld [vmem:[#allocation4 + $0x78] sm:$0xff]
    %v58 = vld [vmem:[#allocation4 + $0x80] sm:$0xf]
    %v59 = vld [vmem:[#allocation4 + $0x88] sm:$0xf]
    %v60 = vld [vmem:[#allocation4 + $0x90] sm:$0xf]
    %v61 = vld [vmem:[#allocation4 + $0x98] sm:$0xf]
    %vm62 = vcmask 293888
    %v64 = vsel %vm62, %v41, 0
    %vm66 = vcmask 1043456
    %v68 = vsel %vm66, %v58, 0
    %v71 = vsel %vm66, %v59, 0
    %v74 = vsel %vm66, %v60, 0
    %v77 = vsel %vm66, %v61, 0
    %79 = vmatpush.msra.mxu0 0.0
    %80 = vmatpush.msra.mxu0 0.0
    %81 = vmatpush.msra.mxu0 0.0
    %82 = vmatpush.msra.mxu0 0.0
    %83 = vmatpush.msra.mxu0 0.0
    %84 = vmatpush.msra.mxu0 0.0
    %85 = vmatpush.msra.mxu0 0.0
    %86 = vmatpush.msra.mxu0 0.0
    %87 = vmatpush.msra.mxu0 0.0
    %88 = vmatpush.msra.mxu0 0.0
    %89 = vmatpush.msra.mxu0 0.0
    %90 = vmatpush.msra.mxu0 %v68
    %91 = vmatpush.msra.mxu0 %v54
    %92 = vmatpush.msra.mxu0 %v50
    %93 = vmatpush.msra.mxu0 %v46
    %94 = vmatpush.msra.mxu0 %v42
    %95 = vmatmul.f32.gmra.mxu0 %v64
    %v96 = vpop.f32.mrf.mxu0
    %v97 = vadd.f32 0.0, %v96
    %98 = vdwg.mxu0
    %99 = vmatpush.msra.mxu0 0.0
    %100 = vmatpush.msra.mxu0 0.0
    %101 = vmatpush.msra.mxu0 0.0
    %102 = vmatpush.msra.mxu0 0.0
    %103 = vmatpush.msra.mxu0 0.0
    %104 = vmatpush.msra.mxu0 0.0
    %105 = vmatpush.msra.mxu0 0.0
    %106 = vmatpush.msra.mxu0 0.0
    %107 = vmatpush.msra.mxu0 0.0
    %108 = vmatpush.msra.mxu0 0.0
    %109 = vmatpush.msra.mxu0 0.0
    %110 = vmatpush.msra.mxu0 %v71
    %111 = vmatpush.msra.mxu0 %v55
    %112 = vmatpush.msra.mxu0 %v51
    %113 = vmatpush.msra.mxu0 %v47
    %114 = vmatpush.msra.mxu0 %v43
    %115 = vmatmul.f32.gmra.mxu0 %v64
    %v116 = vpop.f32.mrf.mxu0
    %v117 = vadd.f32 0.0, %v116
    %118 = vdwg.mxu0
    %119 = vmatpush.msra.mxu0 0.0
    %120 = vmatpush.msra.mxu0 0.0
    %121 = vmatpush.msra.mxu0 0.0
    %122 = vmatpush.msra.mxu0 0.0
    %123 = vmatpush.msra.mxu0 0.0
    %124 = vmatpush.msra.mxu0 0.0
    %125 = vmatpush.msra.mxu0 0.0
    %126 = vmatpush.msra.mxu0 0.0
    %127 = vmatpush.msra.mxu0 0.0
    %128 = vmatpush.msra.mxu0 0.0
    %129 = vmatpush.msra.mxu0 0.0
    %130 = vmatpush.msra.mxu0 %v74
    %131 = vmatpush.msra.mxu0 %v56
    %132 = vmatpush.msra.mxu0 %v52
    %133 = vmatpush.msra.mxu0 %v48
    %134 = vmatpush.msra.mxu0 %v44
    %135 = vmatmul.f32.gmra.mxu0 %v64
    %v136 = vpop.f32.mrf.mxu0
    %v137 = vadd.f32 0.0, %v136
    %138 = vdwg.mxu0
    %139 = vmatpush.msra.mxu0 0.0
    %140 = vmatpush.msra.mxu0 0.0
    %141 = vmatpush.msra.mxu0 0.0
    %142 = vmatpush.msra.mxu0 0.0
    %143 = vmatpush.msra.mxu0 0.0
    %144 = vmatpush.msra.mxu0 0.0
    %145 = vmatpush.msra.mxu0 0.0
    %146 = vmatpush.msra.mxu0 0.0
    %147 = vmatpush.msra.mxu0 0.0
    %148 = vmatpush.msra.mxu0 0.0
    %149 = vmatpush.msra.mxu0 0.0
    %150 = vmatpush.msra.mxu0 %v77
    %151 = vmatpush.msra.mxu0 %v57
    %152 = vmatpush.msra.mxu0 %v53
    %153 = vmatpush.msra.mxu0 %v49
    %154 = vmatpush.msra.mxu0 %v45
    %155 = vmatmul.f32.gmra.mxu0 %v64
    %v156 = vpop.f32.mrf.mxu0
    %v157 = vadd.f32 0.0, %v156
    %158 = vdwg.mxu0
    %159 = vst [vmem:[#allocation7] sm:$0xff] %v97
    %160 = vst [vmem:[#allocation7 + $0x8] sm:$0xff] %v117
    %161 = vst [vmem:[#allocation7 + $0x10] sm:$0xff] %v137
    %162 = vst [vmem:[#allocation7 + $0x18] sm:$0xff] %v157
    %v163 = vld [vmem:[#allocation2] sm:$0xff]
    %v164 = vadd.f32 %v97, %v117
    %v165 = vadd.f32 %v164, %v137
    %v166 = vadd.f32 %v165, %v157
    %167 = vadd.xlane.f32.xlu0 %v166
    %v168 = vpop.xlane.xlu0 %167
    %v169 = vadd.f32 %v163, %v168
    %vm170 = vcmask 7168
    %171 = vst.msk [vmem:[#allocation2] sm:$0xff] %vm170, %v169
    %v172 = vld [vmem:[#allocation3] sm:$0xff]
    %v173 = vmul.f32 %v97, %v97
    %v174 = vmul.f32 %v117, %v117
    %v175 = vmul.f32 %v137, %v137
    %v176 = vmul.f32 %v157, %v157
    %v177 = vadd.f32 %v173, %v174
    %v178 = vadd.f32 %v177, %v175
    %v179 = vadd.f32 %v178, %v176
    %180 = vadd.xlane.f32.xlu0 %v179
    %v181 = vpop.xlane.xlu0 %180
    %v182 = vadd.f32 %v172, %v181
    %183 = vst.msk [vmem:[#allocation3] sm:$0xff] %vm170, %v182
    // Predicated region
    $region26: #{tpu_custom_call.1} parent=1 // pred_check
      %p184 = pneg %p34
    $region27: #{tpu_custom_call.1} parent=1 // pred_check_branch
      %186 = sbr.rel (%p184) target = $region29
    $region28: #{tpu_custom_call.1} parent=1 // pred_region
      %v187 = vld [vmem:[#allocation2] sm:$0xff]
      %v188 = vmul.f32 %v187, 0.001953125
      %v189 = vld [vmem:[#allocation3] sm:$0xff]
      %v190 = vmul.f32 %v189, 0.001953125
      %v191 = vmul.f32 %v188, %v188
      %v192 = vsub.f32 %v190, %v191
      %v193 = vmax.f32 %v192, 0.0
      %v194 = vld [vmem:[%s1] sm:$0xff]
      %v195 = vadd.f32 %v193, 1e-05
      %v196 = vrsqrt.pop %v195
      %v197 = vmul.f32 %v196, %v195
      %v198 = vmul.f32 %v197, %v196
      %v199 = vmul.f32 0.5, %v198
      %v200 = vsub.f32 1.5, %v199
      %v201 = vmul.f32 %v196, %v200
      %vm202 = vweird.f32 %v195
      %vm203 = vweird.f32 %v196
      %vm204 = vmor %vm202, %vm203
      %v205 = vsel %vm204, %v196, %v201
      %v206 = vmul.f32 %v194, %v205
      %v207 = vld [vmem:[%s2] sm:$0xff]
      %v208 = vmul.f32 %v188, %v206
      %v209 = vsub.f32 %v207, %v208
      %v210 = vld [vmem:[#allocation7] sm:$0xff]
      %v211 = vld [vmem:[#allocation7 + $0x8] sm:$0xff]
      %v212 = vld [vmem:[#allocation7 + $0x10] sm:$0xff]
      %v213 = vld [vmem:[#allocation7 + $0x18] sm:$0xff]
      %215 = vset.pattern.permute.xlu0 0
      %216 = vperm.xlu0 %215, %v206
      %v217 = vpop.permute.xlu0 %216
      %v219 = vmul.f32 %v210, %v217
      %v220 = vmul.f32 %v211, %v217
      %v221 = vmul.f32 %v212, %v217
      %v222 = vmul.f32 %v213, %v217
      %224 = vset.pattern.permute.xlu0 0
      %225 = vperm.xlu0 %224, %v209
      %v226 = vpop.permute.xlu0 %225
      %v228 = vadd.f32 %v219, %v226
      %v229 = vadd.f32 %v220, %v226
      %v230 = vadd.f32 %v221, %v226
      %v231 = vadd.f32 %v222, %v226
      %232 = vst [vmem:[#allocation7] sm:$0xff] %v228
      %233 = vst [vmem:[#allocation7 + $0x8] sm:$0xff] %v229
      %234 = vst [vmem:[#allocation7 + $0x10] sm:$0xff] %v230
      %235 = vst [vmem:[#allocation7 + $0x18] sm:$0xff] %v231
    $region29: #{tpu_custom_call.1} parent=1 // pred_fallthru
      _
    // Predicated region
    $region30: #{tpu_custom_call.1} parent=1 // pred_check
      _
    $region31: #{tpu_custom_call.1} parent=1 // pred_check_branch
      %237 = sbr.rel (0) target = $region33
    $region32: #{tpu_custom_call.1} parent=1 // pred_region
      %239 = vsyncadd [#allocation6], 0
      %s241 = sshll.u32 [#allocation7], 4
      %s242 = int_to_ptr.vmem [resolvable:$true] %s241
      %s243 = sshll.u32 %s4, 4
      %s244 = int_to_ptr.hbm [resolvable:$true] %s243
      %246 = dma.vmem_to_hbm [thread:$0]  %s242, 512, %s244, [#allocation6]
    $region33: #{tpu_custom_call.1} parent=1 // pred_fallthru
      _
    // Predicated region
    $region34: #{tpu_custom_call.1} parent=1 // pred_check
      _
    $region35: #{tpu_custom_call.1} parent=1 // pred_check_branch
      %248 = sbr.rel (0) target = $region37
    $region36: #{tpu_custom_call.1} parent=1 // pred_region
      %250 = dma.done [#allocation6], 512
    $region37: #{tpu_custom_call.1} parent=1 // pred_fallthru
      _
    %251 = vsyncpa [#allocation5], 1
    %252 = vsyncpa [#allocation6], 1

</llo_original>
